<compile_context>
chip_gen: v7x
topology: tpu7x:2x2x1
jax: 0.10.0
libtpu: 0.0.40
codegen_flags: <defaults>
</compile_context>

<pallas_src>
import jax
import jax.numpy as jnp
from jax.experimental import pallas as pl
from jax.experimental.pallas import tpu as pltpu


def _round_up(x, m):
    return ((x + m - 1) // m) * m


# ----------------------------- Pallas kernel ------------------------------- #
def _make_kernel(block_rows, fold, tail_rows):
    """Builds the per-(batch, row-tile) kernel with static tiling constants."""
    groups = block_rows // fold

    def kernel(dr_ref, point_ref, out_ref):
        # dr_ref    : (bs*9,) f32, SMEM   -- per-batch (R_pred - R_gt), row-major
        # point_ref : (1, 3, block_rows, 128) f32, VMEM -- x/y/z planes of a tile
        # out_ref   : (1, fold, 128) f32  -- per-batch resident distance sums
        b = pl.program_id(0)
        t = pl.program_id(1)

        @pl.when(t == 0)
        def _init():
            out_ref[...] = jnp.zeros_like(out_ref)

        px = point_ref[0, 0]          # (block_rows, 128), sublane/lane dense
        py = point_ref[0, 1]
        pz = point_ref[0, 2]

        # 9 scalar reads from SMEM, broadcast for free into the VPU ops below.
        base = b * 9
        d00 = dr_ref[base + 0]; d01 = dr_ref[base + 1]; d02 = dr_ref[base + 2]
        d10 = dr_ref[base + 3]; d11 = dr_ref[base + 4]; d12 = dr_ref[base + 5]
        d20 = dr_ref[base + 6]; d21 = dr_ref[base + 7]; d22 = dr_ref[base + 8]

        # row-vector apply: p @ (R_pred - R_gt)
        ox = px * d00 + py * d10 + pz * d20
        oy = px * d01 + py * d11 + pz * d21
        oz = px * d02 + py * d12 + pz * d22

        # zero-padded tail points give sqrt(0) = 0, so they never contribute.
        dist = jnp.sqrt(ox * ox + oy * oy + oz * oz)     # (block_rows, 128)

        def accumulate(d):
            # Fold sublane groups down to a fixed (fold, 128) accumulator:
            # one vreg add per input vreg, keeps the HBM output tiny.
            folded = d.reshape(groups, fold, 128).sum(axis=0)
            out_ref[...] = out_ref[...] + folded[None, :, :]

        if tail_rows == block_rows:
            # Row tiles divide the row count exactly: no masking anywhere.
            accumulate(dist)
        else:
            n_t = pl.num_programs(1)

            @pl.when(t < n_t - 1)
            def _full_tile():
                accumulate(dist)

            @pl.when(t == n_t - 1)
            def _partial_tile():
                rows = jax.lax.broadcasted_iota(jnp.int32, (block_rows, 128), 0)
                accumulate(jnp.where(rows < tail_rows, dist, 0.0))

    return kernel


# ------------------------- quaternion glue (plain JAX) --------------------- #
def matrix_to_quaternion(R):
    # R: (bs, 3, 3) -> q: (bs, 4) in (w, x, y, z)
    r00, r11, r22 = R[..., 0, 0], R[..., 1, 1], R[..., 2, 2]
    w = jnp.sqrt(jnp.maximum(0.0, 1.0 + r00 + r11 + r22)) * 0.5
    x = jnp.sqrt(jnp.maximum(0.0, 1.0 + r00 - r11 - r22)) * 0.5
    y = jnp.sqrt(jnp.maximum(0.0, 1.0 - r00 + r11 - r22)) * 0.5
    z = jnp.sqrt(jnp.maximum(0.0, 1.0 - r00 - r11 + r22)) * 0.5
    x = jnp.copysign(x, R[..., 2, 1] - R[..., 1, 2])
    y = jnp.copysign(y, R[..., 0, 2] - R[..., 2, 0])
    z = jnp.copysign(z, R[..., 1, 0] - R[..., 0, 1])
    return jnp.stack([w, x, y, z], axis=-1)


def quaternion_invert(q):
    return q * jnp.asarray([1.0, -1.0, -1.0, -1.0], dtype=q.dtype)


def standardize_quaternion(q):
    return jnp.where(q[..., 0:1] < 0, -q, q)


def _quaternion_to_matrix(q):
    # pytorch3d convention, q = (r, i, j, k)
    r, i, j, k = q[..., 0], q[..., 1], q[..., 2], q[..., 3]
    two_s = 2.0 / jnp.sum(q * q, axis=-1)
    R = jnp.stack([
        1 - two_s * (j * j + k * k), two_s * (i * j - k * r), two_s * (i * k + j * r),
        two_s * (i * j + k * r), 1 - two_s * (i * i + k * k), two_s * (j * k - i * r),
        two_s * (i * k - j * r), two_s * (j * k + i * r), 1 - two_s * (i * i + j * j),
    ], axis=-1).reshape(q.shape[:-1] + (3, 3))
    return R


# ------------------------------- wrapper ----------------------------------- #
def add_loss_keypoint(keypoint_pred, class_pred, keypoint_pnp, gt, point,
                      *, max_block_rows=2048):
    bs, num_point, _ = point.shape

    # class selection (mirrors keypointPred[arange(bs), classPred].squeeze())
    cls = jnp.argmax(class_pred, axis=-1)                 # (bs,)
    _kp2d = keypoint_pred[jnp.arange(bs), cls]            # (bs, num_kp, 2)
    del _kp2d  # only consumed by the PnP solve below

    # TODO(synk): cv2.solvePnPRansac / cv2.Rodrigues have no Pallas/JAX
    # equivalent; use identity rotations as a deterministic predR placeholder.
    predR = jnp.broadcast_to(jnp.eye(3, dtype=jnp.float32), (bs, 3, 3))
    pred_q = standardize_quaternion(quaternion_invert(matrix_to_quaternion(predR)))

    # Per-batch fused rotation delta (tiny: bs x 9 scalars), 1-D flat -> SMEM.
    r_gt = _quaternion_to_matrix(gt.astype(jnp.float32))        # (bs, 3, 3)
    r_pred = _quaternion_to_matrix(pred_q.astype(jnp.float32))  # (bs, 3, 3)
    dr = (r_pred - r_gt).reshape(bs * 9).astype(jnp.float32)

    # Sublane/lane-dense retile: (bs, N, 3) -> (bs, 3, ROWS, 128).
    # Pad only up to the next multiple of 128 with zero points (zero distance).
    np128 = _round_up(num_point, 128)
    rows_total = np128 // 128

    point_t = jnp.transpose(point.astype(jnp.float32), (0, 2, 1))  # (bs, 3, N)
    if np128 != num_point:
        point_t = jnp.pad(point_t, ((0, 0), (0, 0), (0, np128 - num_point)))
    point_r = point_t.reshape(bs, 3, rows_total, 128)

    # Row tiling: big payloads (~3 MiB f32 per block) but bounded so the
    # double-buffered footprint stays well under the v7x scoped-VMEM default.
    max_block_rows = max(8, (max_block_rows // 8) * 8)
    block_rows = rows_total if rows_total <= max_block_rows else max_block_rows
    n_row_tiles = pl.cdiv(rows_total, block_rows)
    tail_rows = rows_total - (n_row_tiles - 1) * block_rows
    fold = 8 if block_rows % 8 == 0 else block_rows

    kernel = _make_kernel(block_rows, fold, tail_rows)

    partial = pl.pallas_call(
        kernel,
        out_shape=jax.ShapeDtypeStruct((bs, fold, 128), jnp.float32),
        grid=(bs, n_row_tiles),
        in_specs=[
            pl.BlockSpec(memory_space=pltpu.MemorySpace.SMEM),              # dr
            pl.BlockSpec((1, 3, block_rows, 128), lambda b, t: (b, 0, t, 0)),
        ],
        out_specs=pl.BlockSpec((1, fold, 128), lambda b, t: (b, 0, 0)),
        compiler_params=pltpu.CompilerParams(
            dimension_semantics=("parallel", "arbitrary")),
    )(dr, point_r)

    # Final tiny cross-lane reduction + mean with the true point count.
    return jnp.sum(partial) / jnp.float32(bs * num_point)


# --------------------------- pure-JAX reference ----------------------------- #
def _reference(gt_rep, pred_rep, point_flat):
    # Mirrors the original torch math: per-point quaternion -> matrix, two
    # row-vector rotations, per-point L2 distance, mean.
    rm_gt = _quaternion_to_matrix(gt_rep)
    rm_pr = _quaternion_to_matrix(pred_rep)
    p = point_flat[:, None, :]
    pg = jnp.matmul(p, rm_gt)[:, 0, :]
    pp = jnp.matmul(p, rm_pr)[:, 0, :]
    return jnp.mean(jnp.linalg.norm(pp - pg, axis=1))


def _check(bs, num_class, num_kp, num_point, key, **kw):
    k1, k2, k3, k4, k5 = jax.random.split(key, 5)
    keypoint_pred = jax.random.normal(k1, (bs, num_class, num_kp, 2), jnp.float32)
    class_pred = jax.random.normal(k2, (bs, num_class), jnp.float32)
    keypoint_pnp = jax.random.normal(k3, (bs, num_kp, 3), jnp.float32)
    gt = jax.random.normal(k4, (bs, 4), jnp.float32)
    gt = gt / jnp.linalg.norm(gt, axis=-1, keepdims=True)
    point = jax.random.normal(k5, (bs, num_point, 3), jnp.float32)

    loss = add_loss_keypoint(keypoint_pred, class_pred, keypoint_pnp, gt, point, **kw)
    loss = jax.block_until_ready(loss)

    # sanity check against pure-JAX reference (same identity-predR placeholder)
    pred_q = standardize_quaternion(quaternion_invert(
        matrix_to_quaternion(jnp.broadcast_to(jnp.eye(3, dtype=jnp.float32),
                                              (bs, 3, 3)))))
    ref = _reference(jnp.repeat(gt, num_point, axis=0),
                     jnp.repeat(pred_q, num_point, axis=0),
                     point.reshape(-1, 3))
    assert jnp.allclose(loss, ref, rtol=1e-4, atol=1e-5), (loss, ref)
    return loss


if __name__ == "__main__":
    key = jax.random.PRNGKey(0)
    k_a, k_b = jax.random.split(key)

    # Small canonical shapes from the module's forward (single full tile).
    _check(bs=2, num_class=4, num_kp=8, num_point=64, key=k_a)

    # Multi-tile + masked-tail path (2500 pts -> 20 rows, forced 8-row tiles).
    _check(bs=2, num_class=4, num_kp=8, num_point=2500, key=k_b, max_block_rows=8)

    print("KERNEL_OK")
</pallas_src>

<mosaic_0001>
module attributes {stable_mosaic.version = 11 : i64} {
  func.func @kernel(%arg0: i32, %arg1: i32, %arg2: memref<18xf32, #tpu.memory_space<smem>>, %arg3: memref<1x3x1x128xf32, #tpu.memory_space<vmem>>, %arg4: memref<1x1x128xf32, #tpu.memory_space<vmem>>) attributes {dimension_semantics = [#tpu.dimension_semantics<parallel>, #tpu.dimension_semantics<arbitrary>], iteration_bounds = array<i64: 2, 1>, scalar_prefetch = 0 : i64, scratch_operands = 0 : i64, tpu.core_type = #tpu.core_type<tc>, window_params = [{transform_indices = @transform_0, window_bounds = array<i64: 18>}, {transform_indices = @transform_1, window_bounds = array<i64: 1, 3, 1, 128>}, {transform_indices = @transform_2, window_bounds = array<i64: 1, 1, 128>}]} {
    %c0_i32 = arith.constant 0 : i32
    %0 = arith.cmpi eq, %arg1, %c0_i32 : i32
    %1 = arith.extui %0 : i1 to i32
    %c0_i32_0 = arith.constant 0 : i32
    %2 = arith.cmpi ne, %1, %c0_i32_0 : i32
    scf.if %2 {
      %cst_17 = arith.constant 0.000000e+00 : f32
      %73 = vector.broadcast %cst_17 : f32 to vector<1x1x128xf32>
      %c0_18 = arith.constant 0 : index
      %c0_19 = arith.constant 0 : index
      %c0_20 = arith.constant 0 : index
      %74 = vector.load %arg4[%c0_18, %c0_19, %c0_20] : memref<1x1x128xf32, #tpu.memory_space<vmem>>, vector<1x1x128xf32>
      tpu.vector_store %arg4[%c0_18, %c0_19, %c0_20], %73 {strides = array<i32>} : memref<1x1x128xf32, #tpu.memory_space<vmem>>, vector<1x1x128xf32>,
    } else {
    }
    %c0 = arith.constant 0 : index
    %c0_1 = arith.constant 0 : index
    %c0_2 = arith.constant 0 : index
    %c0_3 = arith.constant 0 : index
    %3 = vector.load %arg3[%c0, %c0_1, %c0_2, %c0_3] : memref<1x3x1x128xf32, #tpu.memory_space<vmem>>, vector<1x1x1x128xf32>
    %4 = vector.shape_cast %3 : vector<1x1x1x128xf32> to vector<1x128xf32>
    %c0_4 = arith.constant 0 : index
    %c1 = arith.constant 1 : index
    %c0_5 = arith.constant 0 : index
    %c0_6 = arith.constant 0 : index
    %5 = vector.load %arg3[%c0_4, %c1, %c0_5, %c0_6] : memref<1x3x1x128xf32, #tpu.memory_space<vmem>>, vector<1x1x1x128xf32>
    %6 = vector.shape_cast %5 : vector<1x1x1x128xf32> to vector<1x128xf32>
    %c0_7 = arith.constant 0 : index
    %c2 = arith.constant 2 : index
    %c0_8 = arith.constant 0 : index
    %c0_9 = arith.constant 0 : index
    %7 = vector.load %arg3[%c0_7, %c2, %c0_8, %c0_9] : memref<1x3x1x128xf32, #tpu.memory_space<vmem>>, vector<1x1x1x128xf32>
    %8 = vector.shape_cast %7 : vector<1x1x1x128xf32> to vector<1x128xf32>
    %c9_i32 = arith.constant 9 : i32
    %9 = arith.muli %arg0, %c9_i32 : i32
    %c0_i32_10 = arith.constant 0 : i32
    %10 = arith.addi %9, %c0_i32_10 : i32
    %11 = arith.index_cast %10 : i32 to index
    %12 = memref.load %arg2[%11] : memref<18xf32, #tpu.memory_space<smem>>
    %c1_i32 = arith.constant 1 : i32
    %13 = arith.addi %9, %c1_i32 : i32
    %14 = arith.index_cast %13 : i32 to index
    %15 = memref.load %arg2[%14] : memref<18xf32, #tpu.memory_space<smem>>
    %c2_i32 = arith.constant 2 : i32
    %16 = arith.addi %9, %c2_i32 : i32
    %17 = arith.index_cast %16 : i32 to index
    %18 = memref.load %arg2[%17] : memref<18xf32, #tpu.memory_space<smem>>
    %c3_i32 = arith.constant 3 : i32
    %19 = arith.addi %9, %c3_i32 : i32
    %20 = arith.index_cast %19 : i32 to index
    %21 = memref.load %arg2[%20] : memref<18xf32, #tpu.memory_space<smem>>
    %c4_i32 = arith.constant 4 : i32
    %22 = arith.addi %9, %c4_i32 : i32
    %23 = arith.index_cast %22 : i32 to index
    %24 = memref.load %arg2[%23] : memref<18xf32, #tpu.memory_space<smem>>
    %c5_i32 = arith.constant 5 : i32
    %25 = arith.addi %9, %c5_i32 : i32
    %26 = arith.index_cast %25 : i32 to index
    %27 = memref.load %arg2[%26] : memref<18xf32, #tpu.memory_space<smem>>
    %c6_i32 = arith.constant 6 : i32
    %28 = arith.addi %9, %c6_i32 : i32
    %29 = arith.index_cast %28 : i32 to index
    %30 = memref.load %arg2[%29] : memref<18xf32, #tpu.memory_space<smem>>
    %c7_i32 = arith.constant 7 : i32
    %31 = arith.addi %9, %c7_i32 : i32
    %32 = arith.index_cast %31 : i32 to index
    %33 = memref.load %arg2[%32] : memref<18xf32, #tpu.memory_space<smem>>
    %c8_i32 = arith.constant 8 : i32
    %34 = arith.addi %9, %c8_i32 : i32
    %35 = arith.index_cast %34 : i32 to index
    %36 = memref.load %arg2[%35] : memref<18xf32, #tpu.memory_space<smem>>
    %37 = vector.broadcast %12 : f32 to vector<1x128xf32>
    %38 = arith.mulf %4, %37 : vector<1x128xf32>
    %39 = vector.broadcast %21 : f32 to vector<1x128xf32>
    %40 = arith.mulf %6, %39 : vector<1x128xf32>
    %41 = arith.addf %38, %40 : vector<1x128xf32>
    %42 = vector.broadcast %30 : f32 to vector<1x128xf32>
    %43 = arith.mulf %8, %42 : vector<1x128xf32>
    %44 = arith.addf %41, %43 : vector<1x128xf32>
    %45 = vector.broadcast %15 : f32 to vector<1x128xf32>
    %46 = arith.mulf %4, %45 : vector<1x128xf32>
    %47 = vector.broadcast %24 : f32 to vector<1x128xf32>
    %48 = arith.mulf %6, %47 : vector<1x128xf32>
    %49 = arith.addf %46, %48 : vector<1x128xf32>
    %50 = vector.broadcast %33 : f32 to vector<1x128xf32>
    %51 = arith.mulf %8, %50 : vector<1x128xf32>
    %52 = arith.addf %49, %51 : vector<1x128xf32>
    %53 = vector.broadcast %18 : f32 to vector<1x128xf32>
    %54 = arith.mulf %4, %53 : vector<1x128xf32>
    %55 = vector.broadcast %27 : f32 to vector<1x128xf32>
    %56 = arith.mulf %6, %55 : vector<1x128xf32>
    %57 = arith.addf %54, %56 : vector<1x128xf32>
    %58 = vector.broadcast %36 : f32 to vector<1x128xf32>
    %59 = arith.mulf %8, %58 : vector<1x128xf32>
    %60 = arith.addf %57, %59 : vector<1x128xf32>
    %61 = arith.mulf %44, %44 : vector<1x128xf32>
    %62 = arith.mulf %52, %52 : vector<1x128xf32>
    %63 = arith.addf %61, %62 : vector<1x128xf32>
    %64 = arith.mulf %60, %60 : vector<1x128xf32>
    %65 = arith.addf %63, %64 : vector<1x128xf32>
    %66 = math.sqrt %65 : vector<1x128xf32>
    %67 = vector.shape_cast %66 : vector<1x128xf32> to vector<1x1x128xf32>
    %cst = arith.constant dense<0.000000e+00> : vector<1x128xf32>
    %68 = vector.multi_reduction <add>, %67, %cst [0] : vector<1x1x128xf32> to vector<1x128xf32>
    %c0_11 = arith.constant 0 : index
    %c0_12 = arith.constant 0 : index
    %c0_13 = arith.constant 0 : index
    %69 = vector.load %arg4[%c0_11, %c0_12, %c0_13] : memref<1x1x128xf32, #tpu.memory_space<vmem>>, vector<1x1x128xf32>
    %70 = vector.shape_cast %68 : vector<1x128xf32> to vector<1x1x128xf32>
    %71 = arith.addf %69, %70 : vector<1x1x128xf32>
    %c0_14 = arith.constant 0 : index
    %c0_15 = arith.constant 0 : index
    %c0_16 = arith.constant 0 : index
    %72 = vector.load %arg4[%c0_14, %c0_15, %c0_16] : memref<1x1x128xf32, #tpu.memory_space<vmem>>, vector<1x1x128xf32>
    tpu.vector_store %arg4[%c0_14, %c0_15, %c0_16], %71 {strides = array<i32>} : memref<1x1x128xf32, #tpu.memory_space<vmem>>, vector<1x1x128xf32>,
    return
  }
  func.func @transform_0(%arg0: i32, %arg1: i32) -> i32 {
    %c0_i32 = arith.constant 0 : i32
    %c0_i32_0 = arith.constant 0 : i32
    return %c0_i32 : i32
  }
  func.func @transform_1(%arg0: i32, %arg1: i32) -> (i32, i32, i32, i32) {
    %c0_i32 = arith.constant 0 : i32
    %c0_i32_0 = arith.constant 0 : i32
    %c0_i32_1 = arith.constant 0 : i32
    return %arg0, %c0_i32, %arg1, %c0_i32_0 : i32, i32, i32, i32
  }
  func.func @transform_2(%arg0: i32, %arg1: i32) -> (i32, i32, i32) {
    %c0_i32 = arith.constant 0 : i32
    %c0_i32_0 = arith.constant 0 : i32
    %c0_i32_1 = arith.constant 0 : i32
    return %arg0, %c0_i32, %c0_i32_0 : i32, i32, i32
  }
}

</mosaic_0001>

<llo_original>
// kernel: tpu_custom_call.1
$region0: #{tpu_custom_call.1}
  #allocation0 [shape = 'u32[]', space=smem, size = 0x4, offset = 0x4, fixed_abs, tag = 'smem constant byte address 0x4 - core index']
  #allocation1 [shape = 'u32[144,128]{1,0:T(1,128)}', space=vmem, size = 0x12000, scoped, tag = 'internal scratch']
  %s0 = inlined_call_operand.hbm [shape: f32[18], index: 0, kind: input, shape index: {}]
  %s1 = inlined_call_operand.hbm [shape: f32[2,3,1,128], index: 1, kind: input, shape index: {}]
  %s2 = inlined_call_operand.hbm [shape: f32[2,1,128], index: 2, kind: output, shape index: {}]
  %s3 = sld [smem:[#allocation0]]
  $region53: #{tpu_custom_call.1} parent=0
    _
  %s5 = ssub.s32 1, %s3
  %s6 = scalar_select 0, %s5, %s3
  $region1: #{tpu_custom_call.1} parent=0
    #allocation2 [shape = 'u8[512]{0}', space=smem, size = 0x200, scoped, tag = 'input window, operand 0, single buffered']
    #allocation3 [shape = 's32[2]{0}', space=sflag, size = 0x8, scoped, tag = 'scoped memory for tpu_custom_call.1']
    #allocation4 [shape = 's32[2]{0}', space=sflag, size = 0x8, scoped, tag = 'scoped memory for tpu_custom_call.1']
    #allocation5 [shape = 's32[2]{0}', space=sflag, size = 0x8, scoped, tag = 'scoped memory for tpu_custom_call.1']
    #allocation6 [shape = 'u8[3072]{0}', space=vmem, size = 0xc00, scoped, tag = 'input window, operand 1']
    #allocation7 [shape = 'u8[1024]{0}', space=vmem, size = 0x400, scoped, tag = 'output window, operand 0']
    %7 = vsyncpa [#allocation5], 0
    %8 = vsyncpa [#allocation3], 0
    %s9 = scalar_lea.sflag [#allocation3], 1
    %10 = vsyncpa %s9, 0
    %11 = vsyncpa [#allocation4], 0
    %s12 = scalar_lea.sflag [#allocation4], 1
    %13 = vsyncpa %s12, 0
    loop: start=0, step=1, limit=4
    $region2: #{tpu_custom_call.1} parent=1 // loop_pre_header
      _
    $region3: #{tpu_custom_call.1} parent=1 // loop_header
      %s15 = sphi 0, %s19
      %p16 = scmp.ge.s32.totalorder %s15, 4
      %s22 = sphi 0, %s34
      %s23 = sphi 0, %s30
      %s24 = sphi 0, %s22
      %s25 = sphi 0, %s23
      %s26 = sphi 0, %s24
      %s27 = sphi 0, %s25
      %s35 = sphi 0, %s35
      %s37 = sphi 0, %s35
      %s38 = sphi 0, %s37
      %s52 = sphi 0, %s38
      %s60 = sphi 0, %s62
      %s63 = sphi 0, %s60
      %s64 = sphi 0, %s63
      %s80 = sphi 0, %s64
      %s86 = sphi 0, %s88
      %s89 = sphi 0, %s86
      %s90 = sphi 0, %s89
      %s106 = sphi 0, %s90
    $region4: #{tpu_custom_call.1} parent=1 // loop_header_branch
      %18 = sbr.rel (%p16) target = $region8
    $region5: #{tpu_custom_call.1} parent=1 // loop_body
      %s20 = ssub.s32 %s15, 1
      %s21 = ssub.s32 %s15, 2
      %s28 = sadd.s32 1, %s23
      %p29 = scmp.ge.s32.totalorder %s28, 1
      %s30 = scalar_select %p29, 0, %s28
      %s31 = sadd.s32 1, %s22
      %s32 = scalar_select %p29, %s31, %s22
      %p33 = scmp.ge.s32.totalorder %s32, 2
      %s34 = scalar_select %p33, 0, %s32
      %s36 = sadd.s32 %s35, 1
      %p39 = scmp.eq.s32.totalorder %s15, 1
      %p40 = scmp.ne.s32.totalorder %s35, %s37
      %p41 = scmp.eq.s32.totalorder %s15, 0
      %p42 = por %p40, %p41
      %p43 = scmp.ne.s32.totalorder %s35, %s37
      %p44 = scmp.eq.s32.totalorder %s20, 1
      %p45 = por %p43, %p44
      %p46 = scmp.ne.s32.totalorder %s37, %s38
      %p47 = scmp.eq.s32.totalorder %s20, 0
      %p48 = por %p46, %p47
      %p49 = scmp.ne.s32.totalorder %s37, %s38
      %p50 = scmp.eq.s32.totalorder %s21, 1
      %p51 = por %p49, %p50
      %p53 = scmp.ne.s32.totalorder %s38, %s52
      %p54 = scmp.eq.s32.totalorder %s21, 0
      %p55 = por %p53, %p54
      %s56 = ssub.s32 %s22, %s34
      %s57 = ssub.s32 %s23, %s30
      %s58 = sor.u32 %s56, %s57
      %p59 = scmp.eq.s32.totalorder %s58, 0
      %s61 = sadd.s32 %s60, 1
      %s62 = scalar_select %p59, %s60, %s61
      %p65 = pneg %p59
      %p66 = scmp.eq.s32.totalorder %s15, 1
      %p67 = por %p65, %p66
      %p68 = scmp.ne.s32.totalorder %s60, %s63
      %p69 = scmp.eq.s32.totalorder %s15, 0
      %p70 = por %p68, %p69
      %p71 = scmp.ne.s32.totalorder %s60, %s63
      %p72 = scmp.eq.s32.totalorder %s20, 1
      %p73 = por %p71, %p72
      %p74 = scmp.ne.s32.totalorder %s63, %s64
      %p75 = scmp.eq.s32.totalorder %s20, 0
      %p76 = por %p74, %p75
      %p77 = scmp.ne.s32.totalorder %s63, %s64
      %p78 = scmp.eq.s32.totalorder %s21, 1
      %p79 = por %p77, %p78
      %p81 = scmp.ne.s32.totalorder %s64, %s80
      %p82 = scmp.eq.s32.totalorder %s21, 0
      %p83 = por %p81, %p82
      %s84 = ssub.s32 %s22, %s34
      %p85 = scmp.eq.s32.totalorder %s84, 0
      %s87 = sadd.s32 %s86, 1
      %s88 = scalar_select %p85, %s86, %s87
      %p91 = pneg %p85
      %p92 = scmp.eq.s32.totalorder %s15, 1
      %p93 = por %p91, %p92
      %p94 = scmp.ne.s32.totalorder %s86, %s89
      %p95 = scmp.eq.s32.totalorder %s15, 0
      %p96 = por %p94, %p95
      %p97 = scmp.ne.s32.totalorder %s86, %s89
      %p98 = scmp.eq.s32.totalorder %s20, 1
      %p99 = por %p97, %p98
      %p100 = scmp.ne.s32.totalorder %s89, %s90
      %p101 = scmp.eq.s32.totalorder %s20, 0
      %p102 = por %p100, %p101
      %p103 = scmp.ne.s32.totalorder %s89, %s90
      %p104 = scmp.eq.s32.totalorder %s21, 1
      %p105 = por %p103, %p104
      %p107 = scmp.ne.s32.totalorder %s90, %s106
      %p108 = scmp.eq.s32.totalorder %s21, 0
      %p109 = por %p107, %p108
      %p110 = scmp.le.s32.totalorder 1, %s15
      %p111 = scmp.lt.s32.totalorder %s15, 3
      %p112 = pnand %p110, %p111
      %p113 = pneg %p112
      // Predicated region
      $region9: #{tpu_custom_call.1} parent=5 // pred_check
        _
      $region10: #{tpu_custom_call.1} parent=5 // pred_check_branch
        %115 = sbr.rel (%p112) target = $region12
      $region11: #{tpu_custom_call.1} parent=5 // pred_region
        %s116 = ssub.s32 %s15, 1
        // Predicated region
        $region13: #{tpu_custom_call.1} parent=11 // pred_check
          %p117 = pneg %p48
        $region14: #{tpu_custom_call.1} parent=11 // pred_check_branch
          %119 = sbr.rel (%p117) target = $region16
        $region15: #{tpu_custom_call.1} parent=11 // pred_region
          %s121 = ssub.s32 16, 16
          %122 = vsyncadd [#allocation5], %s121
          %125 = dma.hbm_to_smem %s0, 16, [#allocation2], [#allocation5]
        $region16: #{tpu_custom_call.1} parent=11 // pred_fallthru
          _
      $region12: #{tpu_custom_call.1} parent=5 // pred_fallthru
        _
      %p126 = scmp.lt.s32.totalorder %s15, 2
      // Predicated region
      $region17: #{tpu_custom_call.1} parent=5 // pred_check
        %p127 = pneg %p126
      $region18: #{tpu_custom_call.1} parent=5 // pred_check_branch
        %129 = sbr.rel (%p127) target = $region20
      $region19: #{tpu_custom_call.1} parent=5 // pred_region
        // Predicated region
        $region21: #{tpu_custom_call.1} parent=19 // pred_check
          %p130 = pneg %p70
        $region22: #{tpu_custom_call.1} parent=19 // pred_check_branch
          %132 = sbr.rel (%p130) target = $region24
        $region23: #{tpu_custom_call.1} parent=19 // pred_region
          %s133 = sand.u32 %s60, 1
          %s134 = scalar_lea.sflag [#allocation3], %s133
          %s135 = sand.u32 %s60, 1
          %s136 = smul.addr %s135, 3
          %s137 = scalar_lea.vmem [#allocation6], %s136
          %s139 = ssub.s32 48, 48
          %140 = vsyncadd %s134, %s139
          %s141 = smul.addr %s22, 3
          %s142 = sadd.s32 %s23, %s141
          %s143 = smul.addr %s142, 16
          %s144 = scalar_lea.hbm %s1, %s143
          %s145 = sshll.u32 %s137, 4
          %s146 = int_to_ptr.vmem [resolvable:$true] %s145
          %151 = dma.hbm_to_vmem [thread:$0]  %s144, 48, %s146, %s134, 16, 16, 1
        $region24: #{tpu_custom_call.1} parent=19 // pred_fallthru
          _
      $region20: #{tpu_custom_call.1} parent=5 // pred_fallthru
        _
      %p152 = scmp.le.s32.totalorder 1, %s15
      %p153 = scmp.lt.s32.totalorder %s15, 3
      %p154 = pnand %p152, %p153
      %p155 = pneg %p154
      // Predicated region
      $region25: #{tpu_custom_call.1} parent=5 // pred_check
        _
      $region26: #{tpu_custom_call.1} parent=5 // pred_check_branch
        %157 = sbr.rel (%p154) target = $region28
      $region27: #{tpu_custom_call.1} parent=5 // pred_region
        %s158 = ssub.s32 %s15, 1
        // Predicated region
        $region29: #{tpu_custom_call.1} parent=27 // pred_check
          %p159 = pneg %p48
        $region30: #{tpu_custom_call.1} parent=27 // pred_check_branch
          %161 = sbr.rel (%p159) target = $region32
        $region31: #{tpu_custom_call.1} parent=27 // pred_region
          %162 = dma.done [#allocation5], 16
        $region32: #{tpu_custom_call.1} parent=27 // pred_fallthru
          _
        %s163 = sand.u32 %s63, 1
        %s164 = scalar_lea.sflag [#allocation3], %s163
        %s165 = sand.u32 %s63, 1
        %s166 = smul.addr %s165, 3
        %s167 = scalar_lea.vmem [#allocation6], %s166
        // Predicated region
        $region33: #{tpu_custom_call.1} parent=27 // pred_check
          %p168 = pneg %p76
        $region34: #{tpu_custom_call.1} parent=27 // pred_check_branch
          %170 = sbr.rel (%p168) target = $region36
        $region35: #{tpu_custom_call.1} parent=27 // pred_region
          %171 = dma.done %s164, 48
        $region36: #{tpu_custom_call.1} parent=27 // pred_fallthru
          _
        %172 = sfence
        %p173 = pneg %p48
        %p174 = pneg %p45
        %s175 = sand.u32 %s63, 1
        %s176 = scalar_lea.sflag [#allocation3], %s175
        %s177 = sand.u32 %s63, 1
        %s178 = smul.addr %s177, 3
        %s179 = scalar_lea.vmem [#allocation6], %s178
        %p180 = pneg %p76
        %p181 = pneg %p73
        %p182 = pneg %p102
        %p183 = pneg %p99
        %s184 = sand.u32 %s89, 1
        %s185 = scalar_lea.sflag [#allocation4], %s184
        %s186 = sand.u32 %s89, 1
        %s187 = scalar_lea.vmem [#allocation7], %s186
        %p188 = scmp.eq.s32.totalorder %s25, 0
        // Predicated region
        $region37: #{tpu_custom_call.1} parent=27 // pred_check
          %p189 = pneg %p188
        $region38: #{tpu_custom_call.1} parent=27 // pred_check_branch
          %191 = sbr.rel (%p189) target = $region40
        $region39: #{tpu_custom_call.1} parent=27 // pred_region
          %192 = vst [vmem:[%s187] sm:$0x1] 0.0
        $region40: #{tpu_custom_call.1} parent=27 // pred_fallthru
          _
        %v193 = vld [vmem:[%s167] sm:$0x1]
        %s194 = scalar_lea.vmem %s167, 1 [#allocation6]
        %v195 = vld [vmem:[%s194] sm:$0x1]
        %s196 = scalar_lea.vmem %s167, 2 [#allocation6]
        %v197 = vld [vmem:[%s196] sm:$0x1]
        %s198 = smul.u32 %s24, 9
        %s199 = sld [smem:[#allocation2 + %s198]]
        %s200 = sadd.s32 %s198, 1
        %s201 = sld [smem:[#allocation2 + %s200]]
        %s202 = sadd.s32 %s198, 2
        %s203 = sld [smem:[#allocation2 + %s202]]
        %s204 = sadd.s32 %s198, 3
        %s205 = sld [smem:[#allocation2 + %s204]]
        %s206 = sadd.s32 %s198, 4
        %s207 = sld [smem:[#allocation2 + %s206]]
        %s208 = sadd.s32 %s198, 5
        %s209 = sld [smem:[#allocation2 + %s208]]
        %s210 = sadd.s32 %s198, 6
        %s211 = sld [smem:[#allocation2 + %s210]]
        %s212 = sadd.s32 %s198, 7
        %s213 = sld [smem:[#allocation2 + %s212]]
        %s214 = sadd.s32 %s198, 8
        %s215 = sld [smem:[#allocation2 + %s214]]
        %v216 = vstv %s199
        %v217 = vmul.f32 %v193, %v216
        %v218 = vstv %s205
        %v219 = vmul.f32 %v195, %v218
        %v220 = vadd.f32 %v217, %v219
        %v221 = vstv %s211
        %v222 = vmul.f32 %v197, %v221
        %v223 = vadd.f32 %v220, %v222
        %v224 = vstv %s201
        %v225 = vmul.f32 %v193, %v224
        %v226 = vstv %s207
        %v227 = vmul.f32 %v195, %v226
        %v228 = vadd.f32 %v225, %v227
        %v229 = vstv %s213
        %v230 = vmul.f32 %v197, %v229
        %v231 = vadd.f32 %v228, %v230
        %v232 = vstv %s203
        %v233 = vmul.f32 %v193, %v232
        %v234 = vstv %s209
        %v235 = vmul.f32 %v195, %v234
        %v236 = vadd.f32 %v233, %v235
        %v237 = vstv %s215
        %v238 = vmul.f32 %v197, %v237
        %v239 = vadd.f32 %v236, %v238
        %v240 = vmul.f32 %v223, %v223
        %v241 = vmul.f32 %v231, %v231
        %v242 = vadd.f32 %v240, %v241
        %v243 = vmul.f32 %v239, %v239
        %v244 = vadd.f32 %v242, %v243
        %v245 = vrsqrt.pop %v244
        %v246 = vmul.f32 %v244, %v245
        %vm247 = vcmp.eq.f32.partialorder %v244, inf
        %v248 = vsel %vm247, %v244, %v246
        %vm249 = vcmp.eq.f32.partialorder %v244, 0.0
        %v250 = vand.u32 %v244, 2147483648
        %v251 = vsel %vm249, %v250, %v248
        %v252 = vadd.f32 %v251, 0.0
        %v253 = vld [vmem:[%s187] sm:$0x1]
        %v254 = vadd.f32 %v253, %v252
        %255 = vst [vmem:[%s187] sm:$0x1] %v254
        %s256 = sand.u32 %s89, 1
        %s257 = scalar_lea.sflag [#allocation4], %s256
        %s258 = sand.u32 %s89, 1
        %s259 = scalar_lea.vmem [#allocation7], %s258
        // Predicated region
        $region41: #{tpu_custom_call.1} parent=27 // pred_check
          %p260 = pneg %p99
        $region42: #{tpu_custom_call.1} parent=27 // pred_check_branch
          %262 = sbr.rel (%p260) target = $region44
        $region43: #{tpu_custom_call.1} parent=27 // pred_region
          %s264 = ssub.s32 16, 16
          %265 = vsyncadd %s257, %s264
          %s266 = smul.addr %s24, 16
          %s267 = scalar_lea.hbm %s2, %s266
          %s269 = sshll.u32 %s259, 4
          %s270 = int_to_ptr.vmem [resolvable:$true] %s269
          %272 = dma.vmem_to_hbm [thread:$0]  %s270, 16, %s267, %s257
        $region44: #{tpu_custom_call.1} parent=27 // pred_fallthru
          _
      $region28: #{tpu_custom_call.1} parent=5 // pred_fallthru
        _
      %p273 = scmp.le.s32.totalorder 2, %s15
      // Predicated region
      $region45: #{tpu_custom_call.1} parent=5 // pred_check
        %p274 = pneg %p273
      $region46: #{tpu_custom_call.1} parent=5 // pred_check_branch
        %276 = sbr.rel (%p274) target = $region48
      $region47: #{tpu_custom_call.1} parent=5 // pred_region
        %s277 = ssub.s32 %s15, 2
        // Predicated region
        $region49: #{tpu_custom_call.1} parent=47 // pred_check
          %p278 = pneg %p105
        $region50: #{tpu_custom_call.1} parent=47 // pred_check_branch
          %280 = sbr.rel (%p278) target = $region52
        $region51: #{tpu_custom_call.1} parent=47 // pred_region
          %s281 = sand.u32 %s90, 1
          %s282 = scalar_lea.sflag [#allocation4], %s281
          %s283 = sand.u32 %s90, 1
          %s284 = scalar_lea.vmem [#allocation7], %s283
          %285 = dma.done %s282, 16
        $region52: #{tpu_custom_call.1} parent=47 // pred_fallthru
          _
      $region48: #{tpu_custom_call.1} parent=5 // pred_fallthru
        _
    $region6: #{tpu_custom_call.1} parent=1 // loop_footer
      %s19 = sadd.s32 1, %s15
    $region7: #{tpu_custom_call.1} parent=1 // loop_footer_branch
      %14 = sbr.rel target = $region3
    $region8: #{tpu_custom_call.1} parent=1 // loop_exit
      _
    %286 = vsyncpa [#allocation3], 1
    %s287 = scalar_lea.sflag [#allocation3], 1
    %288 = vsyncpa %s287, 1
    %289 = vsyncpa [#allocation4], 1
    %s290 = scalar_lea.sflag [#allocation4], 1
    %291 = vsyncpa %s290, 1
    %292 = vsyncpa [#allocation5], 1
    %s293 = scalar_lea.sflag [#allocation5], 1
    %294 = vsyncpa %s293, 1

</llo_original>
